<compile_context>
chip_gen: v7x
topology: tpu7x:2x2x1
jax: 0.10.0
libtpu: 0.0.40
codegen_flags: <defaults>
</compile_context>

<pallas_src>
import functools

import jax
import jax.numpy as jnp
from jax.experimental import pallas as pl
from jax.experimental.pallas import tpu as pltpu


def _hswish_kernel(x_ref, o_ref):
    x = x_ref[...]
    t = jnp.clip(x + 3.0, 0.0, 6.0)          # relu6(x + 3)
    o_ref[...] = x * t * (1.0 / 6.0)          # constant mul instead of divide


# Widest lane width first: lane-dense output is the biggest single lever for
# streaming kernels (long unmasked vst, fewer grid steps).
_LANE_CANDIDATES = (32768, 16384, 8192, 4096, 2048, 1024, 512, 256, 128)


@functools.lru_cache(maxsize=1)
def _tpu_budgets():
    """Returns (target_block_bytes, vmem_limit_bytes), generation-aware."""
    try:
        vmem_cap = int(pltpu.get_tpu_info().vmem_capacity_bytes)
    except Exception:
        vmem_cap = None
    if vmem_cap is not None and vmem_cap > 96 * 1024 * 1024:
        # v5e / v6e class (128 MiB VMEM): ~4 MiB blocks already sit at the HBM
        # roofline knee; raise the scoped limit so 4 x 4 MiB buffers fit easily.
        return 4 * 1024 * 1024, 64 * 1024 * 1024
    # v7x class (64 MiB physical VMEM, ~3.2 TB/s HBM) or unknown: 8 MiB blocks
    # cut per-step overhead to <10%; 2x-in + 2x-out = 32 MiB < 48 MiB limit.
    return 8 * 1024 * 1024, 48 * 1024 * 1024


def _pick_block_rows(rows, lanes, itemsize, target_block_bytes):
    # Sublane packing granularity: f32 -> 8, bf16 -> 16, int8 -> 32.
    granule = max(8, 32 // max(1, itemsize))
    row_bytes = lanes * itemsize
    block_rows = max(granule,
                     (target_block_bytes // row_bytes) // granule * granule)
    if block_rows * 2 <= rows:
        return block_rows                 # already >= 2 grid steps
    # Force a 2-step grid (pipelining + dual-TC on v7x) whenever possible.
    half = -(-((rows + 1) // 2) // granule) * granule
    if granule <= half < rows:
        return half
    return rows                           # tiny tensor: single full-extent block


def _run_2d(x2d, block_rows, lanes, vmem_limit):
    rows = x2d.shape[0]
    n = x2d.size
    return pl.pallas_call(
        _hswish_kernel,
        out_shape=jax.ShapeDtypeStruct(x2d.shape, x2d.dtype),
        grid_spec=pltpu.PrefetchScalarGridSpec(
            num_scalar_prefetch=0,
            grid=(pl.cdiv(rows, block_rows),),
            in_specs=[pl.BlockSpec((block_rows, lanes), lambda i: (i, 0))],
            out_specs=pl.BlockSpec((block_rows, lanes), lambda i: (i, 0)),
        ),
        compiler_params=pltpu.CompilerParams(
            dimension_semantics=("parallel",),
            vmem_limit_bytes=vmem_limit,
        ),
        cost_estimate=pl.CostEstimate(
            flops=3 * n, transcendentals=0,
            bytes_accessed=2 * n * x2d.dtype.itemsize),
    )(x2d)


def _run_1d(x1d, block_n, vmem_limit):
    n = x1d.shape[0]
    return pl.pallas_call(
        _hswish_kernel,
        out_shape=jax.ShapeDtypeStruct(x1d.shape, x1d.dtype),
        grid_spec=pltpu.PrefetchScalarGridSpec(
            num_scalar_prefetch=0,
            grid=(pl.cdiv(n, block_n),),
            in_specs=[pl.BlockSpec((block_n,), lambda i: (i,))],
            out_specs=pl.BlockSpec((block_n,), lambda i: (i,)),
        ),
        compiler_params=pltpu.CompilerParams(
            dimension_semantics=("parallel",),
            vmem_limit_bytes=vmem_limit,
        ),
        cost_estimate=pl.CostEstimate(
            flops=3 * n, transcendentals=0,
            bytes_accessed=2 * n * x1d.dtype.itemsize),
    )(x1d)


@jax.jit
def hswish(x):
    """Elementwise hard-swish matching torch: x * F.relu6(x + 3.0) / 6.0."""
    orig_shape = x.shape
    n = x.size
    if n == 0:
        return x
    itemsize = jnp.dtype(x.dtype).itemsize
    target_block_bytes, vmem_limit = _tpu_budgets()

    lanes = next((c for c in _LANE_CANDIDATES if n % c == 0), None)
    if lanes is not None:
        # Fast path: pure (metadata-only) reshape to a lane-dense slab.
        rows = n // lanes
        block_rows = _pick_block_rows(rows, lanes, itemsize, target_block_bytes)
        out2d = _run_2d(x.reshape(rows, lanes), block_rows, lanes, vmem_limit)
        return out2d.reshape(orig_shape)

    # Ragged fallback (n % 128 != 0, rare): pad-free 1D path.
    max_single = max(1024, target_block_bytes // itemsize)
    if n <= max_single:
        block_n = n                                       # one full-extent block
    else:
        block_n = (target_block_bytes // itemsize) // 1024 * 1024  # mult of 8*128
    out1d = _run_1d(x.reshape(-1), block_n, vmem_limit)
    return out1d.reshape(orig_shape)


if __name__ == "__main__":
    key = jax.random.PRNGKey(0)
    k1, k2, k3 = jax.random.split(key, 3)

    def ref(v):
        return v * jnp.clip(v + 3.0, 0.0, 6.0) / 6.0

    # Primary: NCHW input matching the PyTorch module usage (B=2, C=4, H=W=16).
    x = jax.random.normal(k1, (2, 4, 16, 16), dtype=jnp.float32) * 4.0
    y = jax.block_until_ready(hswish(x))
    assert y.shape == x.shape and y.dtype == x.dtype
    assert jnp.max(jnp.abs(y - ref(x))) < 1e-4

    # Larger multiple-of-128 case: exercises the lane-dense, >=2-step grid path.
    x_big = jax.random.normal(k2, (2, 32, 64, 64), dtype=jnp.float32) * 4.0
    y_big = jax.block_until_ready(hswish(x_big))
    assert y_big.shape == x_big.shape
    assert jnp.max(jnp.abs(y_big - ref(x_big))) < 1e-4

    # Ragged case (size not a multiple of 128): pad-free 1D fallback.
    x_odd = jax.random.normal(k3, (5, 7, 3), dtype=jnp.float32) * 4.0
    y_odd = jax.block_until_ready(hswish(x_odd))
    assert y_odd.shape == x_odd.shape
    assert jnp.max(jnp.abs(y_odd - ref(x_odd))) < 1e-4

    print("KERNEL_OK")
</pallas_src>

<mosaic_0001>
module attributes {stable_mosaic.version = 11 : i64} {
  func.func @_hswish_kernel(%arg0: i32, %arg1: memref<1x2048xf32, #tpu.memory_space<vmem>>, %arg2: memref<1x2048xf32, #tpu.memory_space<vmem>>) attributes {dimension_semantics = [#tpu.dimension_semantics<parallel>], iteration_bounds = array<i64: 1>, scalar_prefetch = 0 : i64, scratch_operands = 0 : i64, tpu.core_type = #tpu.core_type<tc>, window_params = [{transform_indices = @transform_0, window_bounds = array<i64: 1, 2048>}, {transform_indices = @transform_1, window_bounds = array<i64: 1, 2048>}]} {
    %c0 = arith.constant 0 : index
    %c0_0 = arith.constant 0 : index
    %0 = vector.load %arg1[%c0, %c0_0] : memref<1x2048xf32, #tpu.memory_space<vmem>>, vector<1x2048xf32>
    %cst = arith.constant 3.000000e+00 : f32
    %1 = vector.broadcast %cst : f32 to vector<1x2048xf32>
    %2 = arith.addf %0, %1 : vector<1x2048xf32>
    %cst_1 = arith.constant 0.000000e+00 : f32
    %cst_2 = arith.constant 6.000000e+00 : f32
    %3 = vector.broadcast %cst_1 : f32 to vector<1x2048xf32>
    %4 = arith.maximumf %3, %2 : vector<1x2048xf32>
    %5 = vector.broadcast %cst_2 : f32 to vector<1x2048xf32>
    %6 = arith.minimumf %5, %4 : vector<1x2048xf32>
    %7 = arith.mulf %0, %6 : vector<1x2048xf32>
    %cst_3 = arith.constant 0.166666672 : f32
    %8 = vector.broadcast %cst_3 : f32 to vector<1x2048xf32>
    %9 = arith.mulf %7, %8 : vector<1x2048xf32>
    %c0_4 = arith.constant 0 : index
    %c0_5 = arith.constant 0 : index
    %10 = vector.load %arg2[%c0_4, %c0_5] : memref<1x2048xf32, #tpu.memory_space<vmem>>, vector<1x2048xf32>
    tpu.vector_store %arg2[%c0_4, %c0_5], %9 {strides = array<i32>} : memref<1x2048xf32, #tpu.memory_space<vmem>>, vector<1x2048xf32>,
    return
  }
  func.func @transform_0(%arg0: i32) -> (i32, i32) {
    %c0_i32 = arith.constant 0 : i32
    %c0_i32_0 = arith.constant 0 : i32
    return %arg0, %c0_i32 : i32, i32
  }
  func.func @transform_1(%arg0: i32) -> (i32, i32) {
    %c0_i32 = arith.constant 0 : i32
    %c0_i32_0 = arith.constant 0 : i32
    return %arg0, %c0_i32 : i32, i32
  }
}

</mosaic_0001>

<llo_original>
// kernel: hswish.1
$region0: #{hswish.1}
  #allocation0 [shape = 'u32[]', space=smem, size = 0x4, offset = 0x4, fixed_abs, tag = 'smem constant byte address 0x4 - core index']
  #allocation1 [shape = 'u32[144,128]{1,0:T(1,128)}', space=vmem, size = 0x12000, scoped, tag = 'internal scratch']
  %s0 = inlined_call_operand.vmem [shape: f32[1,2048], index: 0, kind: input, shape index: {}]
  %s1 = inlined_call_operand.vmem [shape: f32[1,2048], index: 1, kind: output, shape index: {}]
  %s2 = sld [smem:[#allocation0]]
  $region14: #{hswish.1} parent=0
    _
  %s4 = ssub.s32 1, %s2
  %s5 = scalar_select 0, %s4, %s2
  // Predicated region
  $region2: #{hswish.1} parent=0 // pred_check
    _
  $region3: #{hswish.1} parent=0 // pred_check_branch
    %7 = sbr.rel (0) target = $region5
  $region4: #{hswish.1} parent=0 // pred_region
    _
  $region5: #{hswish.1} parent=0 // pred_fallthru
    _
  %v8 = vld [vmem:[%s0] sm:$0xff]
  %v9 = vld [vmem:[%s0 + $0x8] sm:$0xff]
  %v10 = vadd.f32 %v8, 3.0
  %v11 = vadd.f32 %v9, 3.0
  %v12 = vmax.f32 %v10, 0.0
  %v13 = vmax.f32 %v11, 0.0
  %v14 = vmin.f32 %v12, 6.0
  %v15 = vmin.f32 %v13, 6.0
  %v16 = vmul.f32 %v8, %v14
  %v17 = vmul.f32 %v9, %v15
  %v18 = vmul.f32 %v16, 0.16666667
  %v19 = vmul.f32 %v17, 0.16666667
  %20 = vst [vmem:[%s1] sm:$0xff] %v18
  %21 = vst [vmem:[%s1 + $0x8] sm:$0xff] %v19
  // Predicated region
  $region6: #{hswish.1} parent=0 // pred_check
    _
  $region7: #{hswish.1} parent=0 // pred_check_branch
    %23 = sbr.rel (0) target = $region9
  $region8: #{hswish.1} parent=0 // pred_region
    _
  $region9: #{hswish.1} parent=0 // pred_fallthru
    _
  // Predicated region
  $region10: #{hswish.1} parent=0 // pred_check
    _
  $region11: #{hswish.1} parent=0 // pred_check_branch
    %25 = sbr.rel (0) target = $region13
  $region12: #{hswish.1} parent=0 // pred_region
    _
  $region13: #{hswish.1} parent=0 // pred_fallthru
    _

</llo_original>
